<compile_context>
chip_gen: v7x
topology: tpu7x:2x2x1
jax: 0.10.0
libtpu: 0.0.40
codegen_flags: <defaults>
</compile_context>

<pallas_src>
import jax
import jax.numpy as jnp
from jax.experimental import pallas as pl
from jax.experimental.pallas import tpu as pltpu

_LANE = 128


def loan_mlp_kernel(xT_ref, w1_ref, b1_ref, w2_ref, b2_ref, w3_ref, b3_ref,
                    outT_ref):
    # xT_ref: [in_size, TB] bf16 (batch on lanes). Weights are PyTorch layout
    # ([out_features, in_features]) in bf16; biases are [out_features, 1] f32.
    xT = xT_ref[...]

    # Layer 1: tanh(W1 @ x^T + b1)            -> [32, TB] f32
    h1 = jnp.dot(w1_ref[...], xT, preferred_element_type=jnp.float32)
    h1 = jnp.tanh(h1 + b1_ref[...])

    # Layer 2: tanh(W2 @ h1 + b2)             -> [32, TB] f32
    h2 = jnp.dot(w2_ref[...], h1.astype(jnp.bfloat16),
                 preferred_element_type=jnp.float32)
    h2 = jnp.tanh(h2 + b2_ref[...])

    # Layer 3: sigmoid(W3 @ h2 + b3)          -> [out_size, TB] f32
    h3 = jnp.dot(w3_ref[...], h2.astype(jnp.bfloat16),
                 preferred_element_type=jnp.float32)
    outT_ref[...] = jax.nn.sigmoid(h3 + b3_ref[...]).astype(outT_ref.dtype)


def loan_model_forward(x, params, *, block_batch=2048,
                       vmem_limit_bytes=48 * 1024 * 1024):
    """x: [batch, in_size] float array. params: dict from init_params()."""
    batch, in_size = x.shape
    out_size = params["w3t"].shape[0]

    # Batch on lanes, bf16 in HBM. Pad batch to a multiple of 128 so every
    # tile (and the output stores) are lane-dense.
    xT = jnp.asarray(x, jnp.bfloat16).T                     # [in_size, batch]
    lane_padded = pl.cdiv(batch, _LANE) * _LANE
    tb = min(block_batch, lane_padded)                      # multiple of 128
    padded = pl.cdiv(lane_padded, tb) * tb
    if padded != batch:
        xT = jnp.pad(xT, ((0, 0), (0, padded - batch)))

    grid = (padded // tb,)
    resident = lambda a: pl.BlockSpec(a.shape, lambda i: (0, 0))

    outT = pl.pallas_call(
        loan_mlp_kernel,
        out_shape=jax.ShapeDtypeStruct((out_size, padded), jnp.float32),
        grid=grid,
        in_specs=[
            pl.BlockSpec((in_size, tb), lambda i: (0, i)),   # x tile
            resident(params["w1t"]), resident(params["b1"]),
            resident(params["w2t"]), resident(params["b2"]),
            resident(params["w3t"]), resident(params["b3"]),
        ],
        out_specs=pl.BlockSpec((out_size, tb), lambda i: (0, i)),
        compiler_params=pltpu.CompilerParams(
            dimension_semantics=("parallel",),
            vmem_limit_bytes=vmem_limit_bytes),
    )(xT, params["w1t"], params["b1"], params["w2t"], params["b2"],
      params["w3t"], params["b3"])

    # Back to [batch, out_size], dropping any batch padding.
    return outT.T[:batch]


def init_params(key, in_size, out_size):
    """nn.Linear-style init. Weights kept in PyTorch [out, in] layout, bf16;
    biases [out, 1], f32."""
    ks = jax.random.split(key, 6)

    def lin(kw, kb, fan_in, fan_out):
        bound = 1.0 / jnp.sqrt(jnp.float32(fan_in))
        w = jax.random.uniform(kw, (fan_out, fan_in), jnp.float32, -bound, bound)
        b = jax.random.uniform(kb, (fan_out, 1), jnp.float32, -bound, bound)
        return w.astype(jnp.bfloat16), b

    w1t, b1 = lin(ks[0], ks[1], in_size, 32)
    w2t, b2 = lin(ks[2], ks[3], 32, 32)
    w3t, b3 = lin(ks[4], ks[5], 32, out_size)
    return {"w1t": w1t, "b1": b1, "w2t": w2t, "b2": b2, "w3t": w3t, "b3": b3}


def loan_model_ref(x, params):
    """Pure-JAX reference using the same bf16-stored weights/inputs."""
    f32 = jnp.float32
    h = jnp.asarray(x, jnp.bfloat16).astype(f32)
    h = jnp.tanh(h @ params["w1t"].astype(f32).T + params["b1"].T)
    h = h.astype(jnp.bfloat16).astype(f32)
    h = jnp.tanh(h @ params["w2t"].astype(f32).T + params["b2"].T)
    h = h.astype(jnp.bfloat16).astype(f32)
    return jax.nn.sigmoid(h @ params["w3t"].astype(f32).T + params["b3"].T)


if __name__ == "__main__":
    key = jax.random.PRNGKey(0)
    k_x, k_x2, k_p = jax.random.split(key, 3)

    batch, in_size, out_size = 8, 16, 2
    params = init_params(k_p, in_size, out_size)

    # Small case: single grid step (batch padded to one 128-lane tile).
    x = jax.random.normal(k_x, (batch, in_size), jnp.float32)
    out = jax.block_until_ready(loan_model_forward(x, params))
    ref = loan_model_ref(x, params)
    assert out.shape == (batch, out_size)
    assert jnp.allclose(out, ref, atol=2e-2, rtol=2e-2)

    # Multi-tile case: exercises batch tiling + padding (300 -> 3 tiles of 128).
    x2 = jax.random.normal(k_x2, (300, in_size), jnp.float32)
    out2 = jax.block_until_ready(loan_model_forward(x2, params, block_batch=128))
    ref2 = loan_model_ref(x2, params)
    assert out2.shape == (300, out_size)
    assert jnp.allclose(out2, ref2, atol=2e-2, rtol=2e-2)

    print("KERNEL_OK")
</pallas_src>

<mosaic_0001>
module attributes {stable_mosaic.version = 11 : i64} {
  func.func @loan_mlp_kernel(%arg0: i32, %arg1: memref<16x128xbf16, #tpu.memory_space<vmem>>, %arg2: memref<32x16xbf16, #tpu.memory_space<vmem>>, %arg3: memref<32x1xf32, #tpu.memory_space<vmem>>, %arg4: memref<32x32xbf16, #tpu.memory_space<vmem>>, %arg5: memref<32x1xf32, #tpu.memory_space<vmem>>, %arg6: memref<2x32xbf16, #tpu.memory_space<vmem>>, %arg7: memref<2x1xf32, #tpu.memory_space<vmem>>, %arg8: memref<2x128xf32, #tpu.memory_space<vmem>>) attributes {dimension_semantics = [#tpu.dimension_semantics<parallel>], iteration_bounds = array<i64: 1>, scalar_prefetch = 0 : i64, scratch_operands = 0 : i64, tpu.core_type = #tpu.core_type<tc>, window_params = [{transform_indices = @transform_0, window_bounds = array<i64: 16, 128>}, {pipeline_mode = #tpu.pipeline_mode<synchronous>, transform_indices = @transform_1, window_bounds = array<i64: 32, 16>}, {pipeline_mode = #tpu.pipeline_mode<synchronous>, transform_indices = @transform_2, window_bounds = array<i64: 32, 1>}, {pipeline_mode = #tpu.pipeline_mode<synchronous>, transform_indices = @transform_3, window_bounds = array<i64: 32, 32>}, {pipeline_mode = #tpu.pipeline_mode<synchronous>, transform_indices = @transform_4, window_bounds = array<i64: 32, 1>}, {pipeline_mode = #tpu.pipeline_mode<synchronous>, transform_indices = @transform_5, window_bounds = array<i64: 2, 32>}, {pipeline_mode = #tpu.pipeline_mode<synchronous>, transform_indices = @transform_6, window_bounds = array<i64: 2, 1>}, {transform_indices = @transform_7, window_bounds = array<i64: 2, 128>}]} {
    %c0 = arith.constant 0 : index
    %c0_0 = arith.constant 0 : index
    %0 = vector.load %arg1[%c0, %c0_0] : memref<16x128xbf16, #tpu.memory_space<vmem>>, vector<16x128xbf16>
    %c0_1 = arith.constant 0 : index
    %c0_2 = arith.constant 0 : index
    %1 = vector.load %arg2[%c0_1, %c0_2] : memref<32x16xbf16, #tpu.memory_space<vmem>>, vector<32x16xbf16>
    %cst = arith.constant dense<0.000000e+00> : vector<32x128xf32>
    %2 = tpu.matmul %1, %0, %cst {dimension_numbers = #tpu.dot_dimension_numbers<[1], [0], [0], [1], [0, 0, 1, 1], [], []>} : vector<32x16xbf16>, vector<16x128xbf16>, vector<32x128xf32> -> vector<32x128xf32>
    %c0_3 = arith.constant 0 : index
    %c0_4 = arith.constant 0 : index
    %3 = vector.load %arg3[%c0_3, %c0_4] : memref<32x1xf32, #tpu.memory_space<vmem>>, vector<32x1xf32>
    %4 = vector.broadcast %3 : vector<32x1xf32> to vector<32x128xf32>
    %5 = arith.addf %2, %4 : vector<32x128xf32>
    %6 = math.tanh %5 : vector<32x128xf32>
    %c0_5 = arith.constant 0 : index
    %c0_6 = arith.constant 0 : index
    %7 = vector.load %arg4[%c0_5, %c0_6] : memref<32x32xbf16, #tpu.memory_space<vmem>>, vector<32x32xbf16>
    %8 = arith.truncf %6 : vector<32x128xf32> to vector<32x128xbf16>
    %cst_7 = arith.constant dense<0.000000e+00> : vector<32x128xf32>
    %9 = tpu.matmul %7, %8, %cst_7 {dimension_numbers = #tpu.dot_dimension_numbers<[1], [0], [0], [1], [0, 0, 1, 1], [], []>} : vector<32x32xbf16>, vector<32x128xbf16>, vector<32x128xf32> -> vector<32x128xf32>
    %c0_8 = arith.constant 0 : index
    %c0_9 = arith.constant 0 : index
    %10 = vector.load %arg5[%c0_8, %c0_9] : memref<32x1xf32, #tpu.memory_space<vmem>>, vector<32x1xf32>
    %11 = vector.broadcast %10 : vector<32x1xf32> to vector<32x128xf32>
    %12 = arith.addf %9, %11 : vector<32x128xf32>
    %13 = math.tanh %12 : vector<32x128xf32>
    %c0_10 = arith.constant 0 : index
    %c0_11 = arith.constant 0 : index
    %14 = vector.load %arg6[%c0_10, %c0_11] : memref<2x32xbf16, #tpu.memory_space<vmem>>, vector<2x32xbf16>
    %15 = arith.truncf %13 : vector<32x128xf32> to vector<32x128xbf16>
    %cst_12 = arith.constant dense<0.000000e+00> : vector<2x128xf32>
    %16 = tpu.matmul %14, %15, %cst_12 {dimension_numbers = #tpu.dot_dimension_numbers<[1], [0], [0], [1], [0, 0, 1, 1], [], []>} : vector<2x32xbf16>, vector<32x128xbf16>, vector<2x128xf32> -> vector<2x128xf32>
    %c0_13 = arith.constant 0 : index
    %c0_14 = arith.constant 0 : index
    %17 = vector.load %arg7[%c0_13, %c0_14] : memref<2x1xf32, #tpu.memory_space<vmem>>, vector<2x1xf32>
    %18 = vector.broadcast %17 : vector<2x1xf32> to vector<2x128xf32>
    %19 = arith.addf %16, %18 : vector<2x128xf32>
    %20 = arith.negf %19 : vector<2x128xf32>
    %21 = math.exp %20 : vector<2x128xf32>
    %cst_15 = arith.constant 1.000000e+00 : f32
    %22 = vector.broadcast %cst_15 : f32 to vector<2x128xf32>
    %23 = arith.addf %22, %21 : vector<2x128xf32>
    %24 = arith.divf %22, %23 : vector<2x128xf32>
    %c0_16 = arith.constant 0 : index
    %c0_17 = arith.constant 0 : index
    %25 = vector.load %arg8[%c0_16, %c0_17] : memref<2x128xf32, #tpu.memory_space<vmem>>, vector<2x128xf32>
    tpu.vector_store %arg8[%c0_16, %c0_17], %24 {strides = array<i32>} : memref<2x128xf32, #tpu.memory_space<vmem>>, vector<2x128xf32>,
    return
  }
  func.func @transform_0(%arg0: i32) -> (i32, i32) {
    %c0_i32 = arith.constant 0 : i32
    %c0_i32_0 = arith.constant 0 : i32
    return %c0_i32, %arg0 : i32, i32
  }
  func.func @transform_1(%arg0: i32) -> (i32, i32) {
    %c0_i32 = arith.constant 0 : i32
    %c0_i32_0 = arith.constant 0 : i32
    %c0_i32_1 = arith.constant 0 : i32
    return %c0_i32, %c0_i32_0 : i32, i32
  }
  func.func @transform_2(%arg0: i32) -> (i32, i32) {
    %c0_i32 = arith.constant 0 : i32
    %c0_i32_0 = arith.constant 0 : i32
    %c0_i32_1 = arith.constant 0 : i32
    return %c0_i32, %c0_i32_0 : i32, i32
  }
  func.func @transform_3(%arg0: i32) -> (i32, i32) {
    %c0_i32 = arith.constant 0 : i32
    %c0_i32_0 = arith.constant 0 : i32
    %c0_i32_1 = arith.constant 0 : i32
    return %c0_i32, %c0_i32_0 : i32, i32
  }
  func.func @transform_4(%arg0: i32) -> (i32, i32) {
    %c0_i32 = arith.constant 0 : i32
    %c0_i32_0 = arith.constant 0 : i32
    %c0_i32_1 = arith.constant 0 : i32
    return %c0_i32, %c0_i32_0 : i32, i32
  }
  func.func @transform_5(%arg0: i32) -> (i32, i32) {
    %c0_i32 = arith.constant 0 : i32
    %c0_i32_0 = arith.constant 0 : i32
    %c0_i32_1 = arith.constant 0 : i32
    return %c0_i32, %c0_i32_0 : i32, i32
  }
  func.func @transform_6(%arg0: i32) -> (i32, i32) {
    %c0_i32 = arith.constant 0 : i32
    %c0_i32_0 = arith.constant 0 : i32
    %c0_i32_1 = arith.constant 0 : i32
    return %c0_i32, %c0_i32_0 : i32, i32
  }
  func.func @transform_7(%arg0: i32) -> (i32, i32) {
    %c0_i32 = arith.constant 0 : i32
    %c0_i32_0 = arith.constant 0 : i32
    return %c0_i32, %arg0 : i32, i32
  }
}

</mosaic_0001>

<llo_original>
// kernel: tpu_custom_call.1
$region0: #{tpu_custom_call.1}
  #allocation0 [shape = 'u32[]', space=smem, size = 0x4, offset = 0x4, fixed_abs, tag = 'smem constant byte address 0x4 - core index']
  #allocation1 [shape = 'u32[144,128]{1,0:T(1,128)}', space=vmem, size = 0x12000, scoped, tag = 'internal scratch']
  %s0 = inlined_call_operand.vmem [shape: bf16[16,128], index: 0, kind: input, shape index: {}]
  %s1 = inlined_call_operand.vmem [shape: bf16[32,16], index: 1, kind: input, shape index: {}]
  %s2 = inlined_call_operand.vmem [shape: f32[32,1], index: 2, kind: input, shape index: {}]
  %s3 = inlined_call_operand.vmem [shape: bf16[32,32], index: 3, kind: input, shape index: {}]
  %s4 = inlined_call_operand.vmem [shape: f32[32,1], index: 4, kind: input, shape index: {}]
  %s5 = inlined_call_operand.vmem [shape: bf16[2,32], index: 5, kind: input, shape index: {}]
  %s6 = inlined_call_operand.vmem [shape: f32[2,1], index: 6, kind: input, shape index: {}]
  %s7 = inlined_call_operand.hbm [shape: f32[2,128], index: 7, kind: output, shape index: {}]
  %s8 = sld [smem:[#allocation0]]
  $region38: #{tpu_custom_call.1} parent=0
    _
  %s10 = ssub.s32 1, %s8
  %s11 = scalar_select 0, %s10, %s8
  $region1: #{tpu_custom_call.1} parent=0
    #allocation2 [shape = 'u8[1024]{0}', space=vmem, size = 0x400, scoped, tag = 'output window, operand 0, single buffered']
    #allocation3 [shape = 's32[1]{0}', space=sflag, size = 0x4, scoped, tag = 'scoped memory for tpu_custom_call.1']
    %12 = vsyncpa [#allocation3], 0
    // Predicated region
    $region2: #{tpu_custom_call.1} parent=1 // pred_check
      _
    $region3: #{tpu_custom_call.1} parent=1 // pred_check_branch
      %14 = sbr.rel (0) target = $region5
    $region4: #{tpu_custom_call.1} parent=1 // pred_region
      _
    $region5: #{tpu_custom_call.1} parent=1 // pred_fallthru
      _
    // Predicated region
    $region6: #{tpu_custom_call.1} parent=1 // pred_check
      _
    $region7: #{tpu_custom_call.1} parent=1 // pred_check_branch
      %16 = sbr.rel (0) target = $region9
    $region8: #{tpu_custom_call.1} parent=1 // pred_region
      _
    $region9: #{tpu_custom_call.1} parent=1 // pred_fallthru
      _
    // Predicated region
    $region10: #{tpu_custom_call.1} parent=1 // pred_check
      _
    $region11: #{tpu_custom_call.1} parent=1 // pred_check_branch
      %18 = sbr.rel (0) target = $region13
    $region12: #{tpu_custom_call.1} parent=1 // pred_region
      _
    $region13: #{tpu_custom_call.1} parent=1 // pred_fallthru
      _
    // Predicated region
    $region14: #{tpu_custom_call.1} parent=1 // pred_check
      _
    $region15: #{tpu_custom_call.1} parent=1 // pred_check_branch
      %20 = sbr.rel (0) target = $region17
    $region16: #{tpu_custom_call.1} parent=1 // pred_region
      _
    $region17: #{tpu_custom_call.1} parent=1 // pred_fallthru
      _
    // Predicated region
    $region18: #{tpu_custom_call.1} parent=1 // pred_check
      _
    $region19: #{tpu_custom_call.1} parent=1 // pred_check_branch
      %22 = sbr.rel (0) target = $region21
    $region20: #{tpu_custom_call.1} parent=1 // pred_region
      _
    $region21: #{tpu_custom_call.1} parent=1 // pred_fallthru
      _
    // Predicated region
    $region22: #{tpu_custom_call.1} parent=1 // pred_check
      _
    $region23: #{tpu_custom_call.1} parent=1 // pred_check_branch
      %24 = sbr.rel (0) target = $region25
    $region24: #{tpu_custom_call.1} parent=1 // pred_region
      _
    $region25: #{tpu_custom_call.1} parent=1 // pred_fallthru
      _
    // Predicated region
    $region26: #{tpu_custom_call.1} parent=1 // pred_check
      _
    $region27: #{tpu_custom_call.1} parent=1 // pred_check_branch
      %26 = sbr.rel (0) target = $region29
    $region28: #{tpu_custom_call.1} parent=1 // pred_region
      _
    $region29: #{tpu_custom_call.1} parent=1 // pred_fallthru
      _
    %v28 = vld [vmem:[%s0] sm:$0xf]
    %v29 = vld [vmem:[%s0 + $0x4] sm:$0xf]
    %v30 = vld [vmem:[%s1] sm:$0xf]
    %v31 = vld [vmem:[%s1 + $0x4] sm:$0xf]
    %v32 = vld [vmem:[%s1 + $0x8] sm:$0xf]
    %v33 = vld [vmem:[%s1 + $0xc] sm:$0xf]
    %v34 = vld [vmem:[%s2] sm:$0xff]
    %v35 = vld [vmem:[%s2 + $0x8] sm:$0xff]
    %v36 = vld [vmem:[%s2 + $0x10] sm:$0xff]
    %v37 = vld [vmem:[%s2 + $0x18] sm:$0xff]
    %39 = vset.pattern.permute.xlu0 0
    %40 = vperm.xlu0 %39, %v34
    %v41 = vpop.permute.xlu0 %40
    %44 = vset.pattern.permute.xlu0 0
    %45 = vperm.xlu0 %44, %v35
    %v46 = vpop.permute.xlu0 %45
    %49 = vset.pattern.permute.xlu0 0
    %50 = vperm.xlu0 %49, %v36
    %v51 = vpop.permute.xlu0 %50
    %54 = vset.pattern.permute.xlu0 0
    %55 = vperm.xlu0 %54, %v37
    %v56 = vpop.permute.xlu0 %55
    %v62 = vunpack.c.l.b16 %v30
    %v63 = vunpack.c.l.b16 %v31
    %v64 = vunpack.c.l.b16 %v32
    %v65 = vunpack.c.l.b16 %v33
    %v66 = vpack.c.b16 %v63, %v62
    %v67 = vpack.c.b16 %v65, %v64
    %v70 = vunpack.c.l.b16 %v28
    %v71 = vunpack.c.l.b16 %v29
    %v72 = vpack.c.b16 %v71, %v70
    %vm74 = vcmask 130048
    %v76 = vsel %vm74, %v66, 0
    %v79 = vsel %vm74, %v67, 0
    %81 = vmatprep.subr.bf16.mxu0 0
    %82 = vmatpush1.bf16.msra.mxu0 %v72
    %83 = vmatprep.subr.bf16.mxu0 0
    %84 = vmatpush1.bf16.msra.mxu0 0
    %85 = vmatprep.subr.bf16.mxu0 0
    %86 = vmatpush1.bf16.msra.mxu0 0
    %87 = vmatprep.subr.bf16.mxu0 0
    %88 = vmatpush1.bf16.msra.mxu0 0
    %89 = vmatprep.subr.bf16.mxu0 0
    %90 = vmatpush1.bf16.msra.mxu0 0
    %91 = vmatprep.subr.bf16.mxu0 0
    %92 = vmatpush1.bf16.msra.mxu0 0
    %93 = vmatprep.subr.bf16.mxu0 0
    %94 = vmatpush1.bf16.msra.mxu0 0
    %95 = vmatprep.subr.bf16.mxu0 0
    %96 = vmatpush1.bf16.msra.mxu0 0
    %97 = vmatprep.subr.bf16.mxu0 0
    %98 = vmatpush1.bf16.msra.mxu0 0
    %99 = vmatprep.subr.bf16.mxu0 0
    %100 = vmatpush1.bf16.msra.mxu0 0
    %101 = vmatprep.subr.bf16.mxu0 0
    %102 = vmatpush1.bf16.msra.mxu0 0
    %103 = vmatprep.subr.bf16.mxu0 0
    %104 = vmatpush1.bf16.msra.mxu0 0
    %105 = vmatprep.subr.bf16.mxu0 0
    %106 = vmatpush1.bf16.msra.mxu0 0
    %107 = vmatprep.subr.bf16.mxu0 0
    %108 = vmatpush1.bf16.msra.mxu0 0
    %109 = vmatprep.subr.bf16.mxu0 0
    %110 = vmatpush1.bf16.msra.mxu0 0
    %111 = vmatprep.subr.bf16.mxu0 0
    %112 = vmatpush1.bf16.msra.mxu0 0
    %113 = vmatprep.mubr.bf16.mxu0 0
    %114 = vmatmul.mubr.bf16.gmra.mrb[0].mxu0 %v76
    %v115 = vpop.f32.mrb[0].mxu0
    %v116 = vadd.f32 %v41, %v115
    %v117 = vpop.f32.mrb[0].mxu0
    %v118 = vpop.f32.mrb[0].mxu0
    %v119 = vadd.f32 %v46, %v118
    %v120 = vpop.f32.mrb[0].mxu0
    %121 = vmatprep.mubr.bf16.mxu0 0
    %122 = vmatmul.mubr.bf16.gmra.mrb[0].mxu0 %v79
    %v123 = vpop.f32.mrb[0].mxu0
    %v124 = vadd.f32 %v51, %v123
    %v125 = vpop.f32.mrb[0].mxu0
    %v126 = vpop.f32.mrb[0].mxu0
    %v127 = vadd.f32 %v56, %v126
    %v128 = vpop.f32.mrb[0].mxu0
    %129 = vdwg.mxu0
    %v130 = vtanh.pop %v116
    %v131 = vtanh.pop %v119
    %v132 = vtanh.pop %v124
    %v133 = vtanh.pop %v127
    %v134 = vld [vmem:[%s3] sm:$0xf]
    %v135 = vld [vmem:[%s3 + $0x4] sm:$0xf]
    %v136 = vld [vmem:[%s3 + $0x8] sm:$0xf]
    %v137 = vld [vmem:[%s3 + $0xc] sm:$0xf]
    %v138 = vpack.c.bf16 %v131, %v130
    %v139 = vpack.c.bf16 %v133, %v132
    %v140 = vld [vmem:[%s4] sm:$0xff]
    %v141 = vld [vmem:[%s4 + $0x8] sm:$0xff]
    %v142 = vld [vmem:[%s4 + $0x10] sm:$0xff]
    %v143 = vld [vmem:[%s4 + $0x18] sm:$0xff]
    %145 = vset.pattern.permute.xlu0 0
    %146 = vperm.xlu0 %145, %v140
    %v147 = vpop.permute.xlu0 %146
    %150 = vset.pattern.permute.xlu0 0
    %151 = vperm.xlu0 %150, %v141
    %v152 = vpop.permute.xlu0 %151
    %155 = vset.pattern.permute.xlu0 0
    %156 = vperm.xlu0 %155, %v142
    %v157 = vpop.permute.xlu0 %156
    %160 = vset.pattern.permute.xlu0 0
    %161 = vperm.xlu0 %160, %v143
    %v162 = vpop.permute.xlu0 %161
    %v168 = vunpack.c.l.b16 %v134
    %v169 = vunpack.c.l.b16 %v135
    %v170 = vunpack.c.l.b16 %v136
    %v171 = vunpack.c.l.b16 %v137
    %v172 = vpack.c.b16 %v169, %v168
    %v173 = vpack.c.b16 %v171, %v170
    %vm174 = vcmask 261120
    %v176 = vsel %vm174, %v172, 0
    %v179 = vsel %vm174, %v173, 0
    %181 = vmatprep.subr.bf16.mxu0 0
    %182 = vmatpush1.bf16.msra.mxu0 %v138
    %183 = vmatprep.subr.bf16.mxu0 0
    %184 = vmatpush1.bf16.msra.mxu0 %v139
    %185 = vmatprep.subr.bf16.mxu0 0
    %186 = vmatpush1.bf16.msra.mxu0 0
    %187 = vmatprep.subr.bf16.mxu0 0
    %188 = vmatpush1.bf16.msra.mxu0 0
    %189 = vmatprep.subr.bf16.mxu0 0
    %190 = vmatpush1.bf16.msra.mxu0 0
    %191 = vmatprep.subr.bf16.mxu0 0
    %192 = vmatpush1.bf16.msra.mxu0 0
    %193 = vmatprep.subr.bf16.mxu0 0
    %194 = vmatpush1.bf16.msra.mxu0 0
    %195 = vmatprep.subr.bf16.mxu0 0
    %196 = vmatpush1.bf16.msra.mxu0 0
    %197 = vmatprep.subr.bf16.mxu0 0
    %198 = vmatpush1.bf16.msra.mxu0 0
    %199 = vmatprep.subr.bf16.mxu0 0
    %200 = vmatpush1.bf16.msra.mxu0 0
    %201 = vmatprep.subr.bf16.mxu0 0
    %202 = vmatpush1.bf16.msra.mxu0 0
    %203 = vmatprep.subr.bf16.mxu0 0
    %204 = vmatpush1.bf16.msra.mxu0 0
    %205 = vmatprep.subr.bf16.mxu0 0
    %206 = vmatpush1.bf16.msra.mxu0 0
    %207 = vmatprep.subr.bf16.mxu0 0
    %208 = vmatpush1.bf16.msra.mxu0 0
    %209 = vmatprep.subr.bf16.mxu0 0
    %210 = vmatpush1.bf16.msra.mxu0 0
    %211 = vmatprep.subr.bf16.mxu0 0
    %212 = vmatpush1.bf16.msra.mxu0 0
    %213 = vmatprep.mubr.bf16.mxu0 0
    %214 = vmatmul.mubr.bf16.gmra.mrb[0].mxu0 %v176
    %v215 = vpop.f32.mrb[0].mxu0
    %v216 = vadd.f32 %v147, %v215
    %v217 = vpop.f32.mrb[0].mxu0
    %v218 = vpop.f32.mrb[0].mxu0
    %v219 = vadd.f32 %v152, %v218
    %v220 = vpop.f32.mrb[0].mxu0
    %221 = vmatprep.mubr.bf16.mxu0 0
    %222 = vmatmul.mubr.bf16.gmra.mrb[0].mxu0 %v179
    %v223 = vpop.f32.mrb[0].mxu0
    %v224 = vadd.f32 %v157, %v223
    %v225 = vpop.f32.mrb[0].mxu0
    %v226 = vpop.f32.mrb[0].mxu0
    %v227 = vadd.f32 %v162, %v226
    %v228 = vpop.f32.mrb[0].mxu0
    %229 = vdwg.mxu0
    %v230 = vtanh.pop %v216
    %v231 = vtanh.pop %v219
    %v232 = vtanh.pop %v224
    %v233 = vtanh.pop %v227
    %v234 = vld [vmem:[%s5] sm:$0x1]
    %v235 = vpack.c.bf16 %v231, %v230
    %v236 = vpack.c.bf16 %v233, %v232
    %v237 = vld [vmem:[%s6] sm:$0x3]
    %239 = vset.pattern.permute.xlu0 0
    %240 = vperm.xlu0 %239, %v237
    %v241 = vpop.permute.xlu0 %240
    %v244 = vsel %vm174, %v234, 0
    %246 = vmatprep.subr.bf16.mxu0 0
    %247 = vmatpush1.bf16.msra.mxu0 %v235
    %248 = vmatprep.subr.bf16.mxu0 0
    %249 = vmatpush1.bf16.msra.mxu0 %v236
    %250 = vmatprep.subr.bf16.mxu0 0
    %251 = vmatpush1.bf16.msra.mxu0 0
    %252 = vmatprep.subr.bf16.mxu0 0
    %253 = vmatpush1.bf16.msra.mxu0 0
    %254 = vmatprep.subr.bf16.mxu0 0
    %255 = vmatpush1.bf16.msra.mxu0 0
    %256 = vmatprep.subr.bf16.mxu0 0
    %257 = vmatpush1.bf16.msra.mxu0 0
    %258 = vmatprep.subr.bf16.mxu0 0
    %259 = vmatpush1.bf16.msra.mxu0 0
    %260 = vmatprep.subr.bf16.mxu0 0
    %261 = vmatpush1.bf16.msra.mxu0 0
    %262 = vmatprep.subr.bf16.mxu0 0
    %263 = vmatpush1.bf16.msra.mxu0 0
    %264 = vmatprep.subr.bf16.mxu0 0
    %265 = vmatpush1.bf16.msra.mxu0 0
    %266 = vmatprep.subr.bf16.mxu0 0
    %267 = vmatpush1.bf16.msra.mxu0 0
    %268 = vmatprep.subr.bf16.mxu0 0
    %269 = vmatpush1.bf16.msra.mxu0 0
    %270 = vmatprep.subr.bf16.mxu0 0
    %271 = vmatpush1.bf16.msra.mxu0 0
    %272 = vmatprep.subr.bf16.mxu0 0
    %273 = vmatpush1.bf16.msra.mxu0 0
    %274 = vmatprep.subr.bf16.mxu0 0
    %275 = vmatpush1.bf16.msra.mxu0 0
    %276 = vmatprep.subr.bf16.mxu0 0
    %277 = vmatpush1.bf16.msra.mxu0 0
    %278 = vmatprep.mubr.bf16.mxu0 0
    %279 = vmatmul.mubr.bf16.gmra.mrb[0].mxu0 %v244
    %v280 = vpop.f32.mrb[0].mxu0
    %v281 = vadd.f32 %v241, %v280
    %v282 = vpop.f32.mrb[0].mxu0
    %v283 = vpop.f32.mrb[0].mxu0
    %v284 = vpop.f32.mrb[0].mxu0
    %285 = vdwg.mxu0
    %v286 = vxor.u32 %v281, 2147483648
    %v287 = vmul.f32 %v286, 1.442695
    %v288 = vpow.pop %v287
    %v289 = vadd.f32 %v288, 1.0
    %v290 = vrcp.pop %v289
    %v291 = vmul.f32 1.0, %v290
    %292 = vst [vmem:[#allocation2] sm:$0x3] %v291
    // Predicated region
    $region30: #{tpu_custom_call.1} parent=1 // pred_check
      _
    $region31: #{tpu_custom_call.1} parent=1 // pred_check_branch
      %294 = sbr.rel (0) target = $region33
    $region32: #{tpu_custom_call.1} parent=1 // pred_region
      %s296 = ssub.s32 32, 32
      %297 = vsyncadd [#allocation3], %s296
      %s299 = sshll.u32 [#allocation2], 4
      %s300 = int_to_ptr.vmem [resolvable:$true] %s299
      %302 = dma.vmem_to_hbm [thread:$0]  %s300, 32, %s7, [#allocation3]
    $region33: #{tpu_custom_call.1} parent=1 // pred_fallthru
      _
    // Predicated region
    $region34: #{tpu_custom_call.1} parent=1 // pred_check
      _
    $region35: #{tpu_custom_call.1} parent=1 // pred_check_branch
      %304 = sbr.rel (0) target = $region37
    $region36: #{tpu_custom_call.1} parent=1 // pred_region
      %305 = dma.done [#allocation3], 32
    $region37: #{tpu_custom_call.1} parent=1 // pred_fallthru
      _
    %306 = vsyncpa [#allocation3], 1

</llo_original>
